<compile_context>
chip_gen: v5e
topology: v5e:2x2
jax: 0.10.0
libtpu: 0.0.40
codegen_flags: <defaults>
</compile_context>

<pallas_src>
import math

import jax
import jax.numpy as jnp
from jax import lax
from jax.experimental import pallas as pl
from jax.experimental.pallas import tpu as pltpu


def _round_up(a: int, b: int) -> int:
    return ((a + b - 1) // b) * b


def _project_readout_kernel(tok_ref, w1_ref, cls_ref, o_ref):
    # tok_ref: (tm, C)   patch tokens for this (batch, token-tile)
    # w1_ref : (C, Cp)   top half of W^T (acts on patch tokens), output-padded
    # cls_ref: (1, Cp)   precomputed  x[:,0] @ W2 + bias  for this batch (f32)
    # o_ref  : (tm, Cp)
    acc = jnp.dot(tok_ref[...], w1_ref[...], preferred_element_type=jnp.float32)
    acc = acc + cls_ref[...]                      # (1, Cp) broadcasts over rows
    # Exact (erf-based) GELU — matches PyTorch nn.GELU() default.
    out = 0.5 * acc * (1.0 + lax.erf(acc * (1.0 / math.sqrt(2.0))))
    o_ref[...] = out.astype(o_ref.dtype)


def project_readout(x, weight, bias, start_index=1, tm=512):
    """ProjectReadout forward.

    x:      [B, N, C]   (CLS/readout token at position 0)
    weight: [C, 2C]     PyTorch nn.Linear weight layout
    bias:   [C]
    returns [B, N-start_index, C]
    """
    B, N, C = x.shape
    T = N - start_index
    out_dtype = x.dtype

    # Split W^T: W1 acts on the patch tokens, W2 on the broadcast CLS readout.
    wT = weight.T                                   # (2C, C)
    w1, w2 = wT[:C, :], wT[C:, :]

    # Fold CLS readout + bias into one f32 row per batch (tiny matmul outside).
    cls_proj = (x[:, 0, :].astype(jnp.float32)
                @ w2.astype(jnp.float32)
                + bias.astype(jnp.float32))         # (B, C)

    tokens = x[:, start_index:, :]                  # (B, T, C)

    # ---- tiling --------------------------------------------------------------
    Cp = _round_up(C, 128)                          # lane-dense, unmasked stores
    sub = 8 if tokens.dtype.itemsize >= 4 else 16   # sublane packing of row tiles

    # Generation-aware VMEM budget (v5e/v6e: 128 MiB chips, v7x: 64 MiB).
    try:
        chip_vmem = int(pltpu.get_tpu_info().vmem_capacity_bytes)
    except Exception:
        chip_vmem = 64 * 2**20
    vmem_cap = int(min(0.75 * chip_vmem, 100 * 2**20))

    tok_isz = tokens.dtype.itemsize
    w_isz = w1.dtype.itemsize
    out_isz = jnp.dtype(out_dtype).itemsize

    # Fit the token tile to the VMEM budget:
    #   W1 single-buffered + cls row + double-buffered token & output tiles.
    fixed_bytes = w_isz * C * Cp + 2 * 4 * Cp
    per_row = 2 * tok_isz * C + 2 * out_isz * Cp
    tm_eff = min(max(sub, _round_up(tm, sub)), _round_up(T, sub))
    avail = vmem_cap - fixed_bytes - (4 << 20)
    if avail > 0:
        fit_rows = max(sub, (avail // per_row) // sub * sub)
        tm_eff = min(tm_eff, fit_rows)

    n_tiles = pl.cdiv(T, tm_eff)
    # v7x megacore: ensure the parallel grid has >= 2 programs so both
    # TensorCores get work (no-op on single-core v5e/v6e).
    if B * n_tiles == 1 and T > sub:
        tm_eff = max(sub, _round_up(pl.cdiv(T, 2), sub))
        n_tiles = pl.cdiv(T, tm_eff)

    grid = (B, n_tiles)

    bytes_needed = fixed_bytes + tm_eff * per_row
    vmem_limit = int(min(max(2 * bytes_needed, 16 * 2**20), vmem_cap))

    # Only the tiny weight / cls operands get channel-padded.  The big token
    # tensor is NOT padded: the cdiv grid + masked partial-tile stores handle a
    # non-divisible T (out-of-bounds rows of the last input tile are
    # unspecified, but Pallas drops the corresponding output writes).
    w1_p = w1 if Cp == C else jnp.pad(w1, ((0, 0), (0, Cp - C)))
    cls_p = cls_proj if Cp == C else jnp.pad(cls_proj, ((0, 0), (0, Cp - C)))
    cls_p = cls_p.reshape(B, 1, Cp)

    def _call(single_buffer_w1):
        w1_kwargs = {"pipeline_mode": pl.Buffered(1)} if single_buffer_w1 else {}
        return pl.pallas_call(
            _project_readout_kernel,
            out_shape=jax.ShapeDtypeStruct((B, T, Cp), out_dtype),
            grid_spec=pltpu.PrefetchScalarGridSpec(
                num_scalar_prefetch=0,
                grid=grid,
                in_specs=[
                    # patch tokens: (batch b, token tile i)
                    pl.BlockSpec((None, tm_eff, C), lambda b, i: (b, i, 0)),
                    # W1: grid-invariant -> resident, single-buffered
                    pl.BlockSpec((C, Cp), lambda b, i: (0, 0), **w1_kwargs),
                    # per-batch precomputed CLS row (+ bias), f32
                    pl.BlockSpec((None, 1, Cp), lambda b, i: (b, 0, 0)),
                ],
                out_specs=pl.BlockSpec((None, tm_eff, Cp), lambda b, i: (b, i, 0)),
            ),
            compiler_params=pltpu.CompilerParams(
                dimension_semantics=("parallel", "parallel"),
                vmem_limit_bytes=vmem_limit,
            ),
        )(tokens, w1_p, cls_p)

    try:
        out = _call(True)
    except Exception:
        # Fallback if this JAX build rejects pipeline_mode=pl.Buffered(1).
        out = _call(False)

    return out if Cp == C else out[..., :C]


def _reference(x, weight, bias, start_index=1):
    readout = jnp.broadcast_to(x[:, 0:1, :], x[:, start_index:, :].shape)
    features = jnp.concatenate([x[:, start_index:, :], readout], axis=-1)
    y = features @ weight.T + bias
    return jax.nn.gelu(y, approximate=False)


if __name__ == "__main__":
    key = jax.random.PRNGKey(0)

    def _check(B, N, C, start_index=1):
        kx, kw, kb = jax.random.split(jax.random.fold_in(key, B * 1000 + N * 10 + C), 3)
        x = jax.random.normal(kx, (B, N, C), dtype=jnp.float32)
        # PyTorch-style Linear init: U(-1/sqrt(fan_in), 1/sqrt(fan_in)), fan_in = 2C.
        bound = 1.0 / math.sqrt(2 * C)
        weight = jax.random.uniform(kw, (C, 2 * C), minval=-bound, maxval=bound,
                                    dtype=jnp.float32)
        bias = jax.random.uniform(kb, (C,), minval=-bound, maxval=bound,
                                  dtype=jnp.float32)

        out = jax.block_until_ready(
            project_readout(x, weight, bias, start_index=start_index))
        ref = _reference(x, weight, bias, start_index=start_index)
        assert out.shape == (B, N - start_index, C)
        assert jnp.allclose(out, ref, atol=1e-5, rtol=1e-5), "mismatch vs JAX reference"

    # CLS + 8 patch tokens, C=32 (small shapes consistent with the module).
    _check(B=2, N=9, C=32)
    # Non-divisible token count and non-128-multiple channels: exercises the
    # masked partial token tile and the Cp output padding/slicing path.
    _check(B=2, N=18, C=48)

    print("KERNEL_OK")
</pallas_src>

<mosaic_0001>
module attributes {stable_mosaic.version = 11 : i64} {
  func.func @_project_readout_kernel(%arg0: i32, %arg1: i32, %arg2: memref<1x8x32xf32, #tpu.memory_space<vmem>>, %arg3: memref<32x128xf32, #tpu.memory_space<vmem>>, %arg4: memref<1x1x128xf32, #tpu.memory_space<vmem>>, %arg5: memref<1x8x128xf32, #tpu.memory_space<vmem>>) attributes {dimension_semantics = [#tpu.dimension_semantics<parallel>, #tpu.dimension_semantics<parallel>], iteration_bounds = array<i64: 2, 1>, scalar_prefetch = 0 : i64, scratch_operands = 0 : i64, tpu.core_type = #tpu.core_type<tc>, window_params = [{transform_indices = @transform_0, window_bounds = array<i64: 1, 8, 32>}, {pipeline_mode = #tpu.pipeline_mode<synchronous>, transform_indices = @transform_1, window_bounds = array<i64: 32, 128>}, {transform_indices = @transform_2, window_bounds = array<i64: 1, 1, 128>}, {transform_indices = @transform_3, window_bounds = array<i64: 1, 8, 128>}]} {
    %c0 = arith.constant 0 : index
    %c0_0 = arith.constant 0 : index
    %c0_1 = arith.constant 0 : index
    %0 = vector.load %arg2[%c0, %c0_0, %c0_1] : memref<1x8x32xf32, #tpu.memory_space<vmem>>, vector<1x8x32xf32>
    %1 = vector.shape_cast %0 : vector<1x8x32xf32> to vector<8x32xf32>
    %c0_2 = arith.constant 0 : index
    %c0_3 = arith.constant 0 : index
    %2 = vector.load %arg3[%c0_2, %c0_3] : memref<32x128xf32, #tpu.memory_space<vmem>>, vector<32x128xf32>
    %cst = arith.constant dense<0.000000e+00> : vector<8x128xf32>
    %3 = tpu.matmul %1, %2, %cst {dimension_numbers = #tpu.dot_dimension_numbers<[1], [0], [0], [1], [0, 0, 1, 1], [], []>} : vector<8x32xf32>, vector<32x128xf32>, vector<8x128xf32> -> vector<8x128xf32>
    %c0_4 = arith.constant 0 : index
    %c0_5 = arith.constant 0 : index
    %c0_6 = arith.constant 0 : index
    %4 = vector.load %arg4[%c0_4, %c0_5, %c0_6] : memref<1x1x128xf32, #tpu.memory_space<vmem>>, vector<1x1x128xf32>
    %5 = vector.shape_cast %4 : vector<1x1x128xf32> to vector<1x128xf32>
    %6 = vector.broadcast %5 : vector<1x128xf32> to vector<8x128xf32>
    %7 = arith.addf %3, %6 : vector<8x128xf32>
    %cst_7 = arith.constant 5.000000e-01 : f32
    %8 = vector.broadcast %cst_7 : f32 to vector<8x128xf32>
    %9 = arith.mulf %8, %7 : vector<8x128xf32>
    %cst_8 = arith.constant 0.707106769 : f32
    %10 = vector.broadcast %cst_8 : f32 to vector<8x128xf32>
    %11 = arith.mulf %7, %10 : vector<8x128xf32>
    %12 = math.erf %11 : vector<8x128xf32>
    %cst_9 = arith.constant 1.000000e+00 : f32
    %13 = vector.broadcast %cst_9 : f32 to vector<8x128xf32>
    %14 = arith.addf %13, %12 : vector<8x128xf32>
    %15 = arith.mulf %9, %14 : vector<8x128xf32>
    %c0_10 = arith.constant 0 : index
    %c0_11 = arith.constant 0 : index
    %c0_12 = arith.constant 0 : index
    %16 = vector.load %arg5[%c0_10, %c0_11, %c0_12] : memref<1x8x128xf32, #tpu.memory_space<vmem>>, vector<1x8x128xf32>
    %17 = vector.shape_cast %16 : vector<1x8x128xf32> to vector<8x128xf32>
    %18 = vector.shape_cast %15 : vector<8x128xf32> to vector<1x8x128xf32>
    tpu.vector_store %arg5[%c0_10, %c0_11, %c0_12], %18 {strides = array<i32>} : memref<1x8x128xf32, #tpu.memory_space<vmem>>, vector<1x8x128xf32>,
    return
  }
  func.func @transform_0(%arg0: i32, %arg1: i32) -> (i32, i32, i32) {
    %c0_i32 = arith.constant 0 : i32
    %c0_i32_0 = arith.constant 0 : i32
    return %arg0, %arg1, %c0_i32 : i32, i32, i32
  }
  func.func @transform_1(%arg0: i32, %arg1: i32) -> (i32, i32) {
    %c0_i32 = arith.constant 0 : i32
    %c0_i32_0 = arith.constant 0 : i32
    %c0_i32_1 = arith.constant 0 : i32
    return %c0_i32, %c0_i32_0 : i32, i32
  }
  func.func @transform_2(%arg0: i32, %arg1: i32) -> (i32, i32, i32) {
    %c0_i32 = arith.constant 0 : i32
    %c0_i32_0 = arith.constant 0 : i32
    %c0_i32_1 = arith.constant 0 : i32
    return %arg0, %c0_i32, %c0_i32_0 : i32, i32, i32
  }
  func.func @transform_3(%arg0: i32, %arg1: i32) -> (i32, i32, i32) {
    %c0_i32 = arith.constant 0 : i32
    %c0_i32_0 = arith.constant 0 : i32
    return %arg0, %arg1, %c0_i32 : i32, i32, i32
  }
}

module attributes {stable_mosaic.version = 11 : i64} {
  func.func @_project_readout_kernel(%arg0: i32, %arg1: i32, %arg2: memref<1x8x32xf32, #tpu.memory_space<vmem>>, %arg3: memref<32x128xf32, #tpu.memory_space<vmem>>, %arg4: memref<1x1x128xf32, #tpu.memory_space<vmem>>, %arg5: memref<1x8x128xf32, #tpu.memory_space<vmem>>) attributes {dimension_semantics = [#tpu.dimension_semantics<parallel>, #tpu.dimension_semantics<parallel>], iteration_bounds = array<i64: 2, 1>, scalar_prefetch = 0 : i64, scratch_operands = 0 : i64, tpu.core_type = #tpu.core_type<tc>, window_params = [{transform_indices = @transform_0, window_bounds = array<i64: 1, 8, 32>}, {pipeline_mode = #tpu.pipeline_mode<synchronous>, transform_indices = @transform_1, window_bounds = array<i64: 32, 128>}, {transform_indices = @transform_2, window_bounds = array<i64: 1, 1, 128>}, {transform_indices = @transform_3, window_bounds = array<i64: 1, 8, 128>}]} {
    %c0 = arith.constant 0 : index
    %c0_0 = arith.constant 0 : index
    %c0_1 = arith.constant 0 : index
    %0 = vector.load %arg2[%c0, %c0_0, %c0_1] : memref<1x8x32xf32, #tpu.memory_space<vmem>>, vector<1x8x32xf32>
    %1 = vector.shape_cast %0 : vector<1x8x32xf32> to vector<8x32xf32>
    %c0_2 = arith.constant 0 : index
    %c0_3 = arith.constant 0 : index
    %2 = vector.load %arg3[%c0_2, %c0_3] : memref<32x128xf32, #tpu.memory_space<vmem>>, vector<32x128xf32>
    %cst = arith.constant dense<0.000000e+00> : vector<8x128xf32>
    %3 = tpu.matmul %1, %2, %cst {dimension_numbers = #tpu.dot_dimension_numbers<[1], [0], [0], [1], [0, 0, 1, 1], [], []>} : vector<8x32xf32>, vector<32x128xf32>, vector<8x128xf32> -> vector<8x128xf32>
    %c0_4 = arith.constant 0 : index
    %c0_5 = arith.constant 0 : index
    %c0_6 = arith.constant 0 : index
    %4 = vector.load %arg4[%c0_4, %c0_5, %c0_6] : memref<1x1x128xf32, #tpu.memory_space<vmem>>, vector<1x1x128xf32>
    %5 = vector.shape_cast %4 : vector<1x1x128xf32> to vector<1x128xf32>
    %6 = vector.broadcast %5 : vector<1x128xf32> to vector<8x128xf32>
    %7 = arith.addf %3, %6 : vector<8x128xf32>
    %cst_7 = arith.constant 5.000000e-01 : f32
    %8 = vector.broadcast %cst_7 : f32 to vector<8x128xf32>
    %9 = arith.mulf %8, %7 : vector<8x128xf32>
    %cst_8 = arith.constant 0.707106769 : f32
    %10 = vector.broadcast %cst_8 : f32 to vector<8x128xf32>
    %11 = arith.mulf %7, %10 : vector<8x128xf32>
    %12 = math.erf %11 : vector<8x128xf32>
    %cst_9 = arith.constant 1.000000e+00 : f32
    %13 = vector.broadcast %cst_9 : f32 to vector<8x128xf32>
    %14 = arith.addf %13, %12 : vector<8x128xf32>
    %15 = arith.mulf %9, %14 : vector<8x128xf32>
    %c0_10 = arith.constant 0 : index
    %c0_11 = arith.constant 0 : index
    %c0_12 = arith.constant 0 : index
    %16 = vector.load %arg5[%c0_10, %c0_11, %c0_12] : memref<1x8x128xf32, #tpu.memory_space<vmem>>, vector<1x8x128xf32>
    %17 = vector.shape_cast %16 : vector<1x8x128xf32> to vector<8x128xf32>
    %18 = vector.shape_cast %15 : vector<8x128xf32> to vector<1x8x128xf32>
    tpu.vector_store %arg5[%c0_10, %c0_11, %c0_12], %18 {strides = array<i32>} : memref<1x8x128xf32, #tpu.memory_space<vmem>>, vector<1x8x128xf32>,
    return
  }
  func.func @transform_0(%arg0: i32, %arg1: i32) -> (i32, i32, i32) {
    %c0_i32 = arith.constant 0 : i32
    %c0_i32_0 = arith.constant 0 : i32
    return %arg0, %arg1, %c0_i32 : i32, i32, i32
  }
  func.func @transform_1(%arg0: i32, %arg1: i32) -> (i32, i32) {
    %c0_i32 = arith.constant 0 : i32
    %c0_i32_0 = arith.constant 0 : i32
    %c0_i32_1 = arith.constant 0 : i32
    return %c0_i32, %c0_i32_0 : i32, i32
  }
  func.func @transform_2(%arg0: i32, %arg1: i32) -> (i32, i32, i32) {
    %c0_i32 = arith.constant 0 : i32
    %c0_i32_0 = arith.constant 0 : i32
    %c0_i32_1 = arith.constant 0 : i32
    return %arg0, %c0_i32, %c0_i32_0 : i32, i32, i32
  }
  func.func @transform_3(%arg0: i32, %arg1: i32) -> (i32, i32, i32) {
    %c0_i32 = arith.constant 0 : i32
    %c0_i32_0 = arith.constant 0 : i32
    return %arg0, %arg1, %c0_i32 : i32, i32, i32
  }
}

</mosaic_0001>

<llo_original>
// kernel: tpu_custom_call.1
$region0: #{tpu_custom_call.1}
  #allocation0 [shape = 'u32[]', space=smem, size = 0x4, offset = 0x4, fixed_abs, tag = 'smem constant byte address 0x4 - core index']
  #allocation1 [shape = 'u32[72,128]{1,0:T(1,128)}', space=vmem, size = 0x9000, scoped, tag = 'internal scratch']
  %s0 = inlined_call_operand.hbm [shape: f32[2,8,32], index: 0, kind: input, shape index: {}]
  %s1 = inlined_call_operand.hbm [shape: f32[32,128], index: 1, kind: input, shape index: {}]
  %s2 = inlined_call_operand.hbm [shape: f32[2,1,128], index: 2, kind: input, shape index: {}]
  %s3 = inlined_call_operand.hbm [shape: f32[2,8,128], index: 3, kind: output, shape index: {}]
  %s4 = sld [smem:[#allocation0]]
  $region57: #{tpu_custom_call.1} parent=0
    _
  %s6 = ssub.s32 1, %s4
  %s7 = scalar_select 0, %s6, %s4
  $region1: #{tpu_custom_call.1} parent=0
    #allocation2 [shape = 'u8[8192]{0}', space=vmem, size = 0x2000, scoped, tag = 'input window, operand 0']
    #allocation3 [shape = 's32[2]{0}', space=sflag, size = 0x8, scoped, tag = 'scoped memory for tpu_custom_call.1']
    #allocation4 [shape = 's32[2]{0}', space=sflag, size = 0x8, scoped, tag = 'scoped memory for tpu_custom_call.1']
    #allocation5 [shape = 'u8[16384]{0}', space=vmem, size = 0x4000, scoped, tag = 'input window, operand 1, single buffered']
    #allocation6 [shape = 's32[1]{0}', space=sflag, size = 0x4, scoped, tag = 'scoped memory for tpu_custom_call.1']
    #allocation7 [shape = 'u8[1024]{0}', space=vmem, size = 0x400, scoped, tag = 'input window, operand 2']
    #allocation8 [shape = 'u8[8192]{0}', space=vmem, size = 0x2000, scoped, tag = 'output window, operand 0']
    %8 = vsyncpa [#allocation3], 0
    %s9 = scalar_lea.sflag [#allocation3], 1
    %10 = vsyncpa %s9, 0
    %11 = vsyncpa [#allocation6], 0
    %12 = vsyncpa [#allocation4], 0
    %s13 = scalar_lea.sflag [#allocation4], 1
    %14 = vsyncpa %s13, 0
    loop: start=0, step=1, limit=4
    $region2: #{tpu_custom_call.1} parent=1 // loop_pre_header
      _
    $region3: #{tpu_custom_call.1} parent=1 // loop_header
      %s16 = sphi 0, %s20
      %p17 = scmp.ge.s32.totalorder %s16, 4
      %s23 = sphi 0, %s35
      %s24 = sphi 0, %s31
      %s25 = sphi 0, %s23
      %s26 = sphi 0, %s24
      %s27 = sphi 0, %s25
      %s28 = sphi 0, %s26
      %s40 = sphi 0, %s42
      %s43 = sphi 0, %s40
      %s44 = sphi 0, %s43
      %s60 = sphi 0, %s44
      %s64 = sphi 0, %s64
      %s66 = sphi 0, %s64
      %s67 = sphi 0, %s66
      %s81 = sphi 0, %s67
      %s87 = sphi 0, %s89
      %s90 = sphi 0, %s87
      %s91 = sphi 0, %s90
      %s107 = sphi 0, %s91
      %s115 = sphi 0, %s117
      %s118 = sphi 0, %s115
      %s119 = sphi 0, %s118
      %s135 = sphi 0, %s119
    $region4: #{tpu_custom_call.1} parent=1 // loop_header_branch
      %19 = sbr.rel (%p17) target = $region8
    $region5: #{tpu_custom_call.1} parent=1 // loop_body
      %s21 = ssub.s32 %s16, 1
      %s22 = ssub.s32 %s16, 2
      %s29 = sadd.s32 1, %s24
      %p30 = scmp.ge.s32.totalorder %s29, 1
      %s31 = scalar_select %p30, 0, %s29
      %s32 = sadd.s32 1, %s23
      %s33 = scalar_select %p30, %s32, %s23
      %p34 = scmp.ge.s32.totalorder %s33, 2
      %s35 = scalar_select %p34, 0, %s33
      %s36 = ssub.s32 %s23, %s35
      %s37 = ssub.s32 %s24, %s31
      %s38 = sor.u32 %s36, %s37
      %p39 = scmp.eq.s32.totalorder %s38, 0
      %s41 = sadd.s32 %s40, 1
      %s42 = scalar_select %p39, %s40, %s41
      %p45 = pneg %p39
      %p46 = scmp.eq.s32.totalorder %s16, 1
      %p47 = por %p45, %p46
      %p48 = scmp.ne.s32.totalorder %s40, %s43
      %p49 = scmp.eq.s32.totalorder %s16, 0
      %p50 = por %p48, %p49
      %p51 = scmp.ne.s32.totalorder %s40, %s43
      %p52 = scmp.eq.s32.totalorder %s21, 1
      %p53 = por %p51, %p52
      %p54 = scmp.ne.s32.totalorder %s43, %s44
      %p55 = scmp.eq.s32.totalorder %s21, 0
      %p56 = por %p54, %p55
      %p57 = scmp.ne.s32.totalorder %s43, %s44
      %p58 = scmp.eq.s32.totalorder %s22, 1
      %p59 = por %p57, %p58
      %p61 = scmp.ne.s32.totalorder %s44, %s60
      %p62 = scmp.eq.s32.totalorder %s22, 0
      %p63 = por %p61, %p62
      %s65 = sadd.s32 %s64, 1
      %p68 = scmp.eq.s32.totalorder %s16, 1
      %p69 = scmp.ne.s32.totalorder %s64, %s66
      %p70 = scmp.eq.s32.totalorder %s16, 0
      %p71 = por %p69, %p70
      %p72 = scmp.ne.s32.totalorder %s64, %s66
      %p73 = scmp.eq.s32.totalorder %s21, 1
      %p74 = por %p72, %p73
      %p75 = scmp.ne.s32.totalorder %s66, %s67
      %p76 = scmp.eq.s32.totalorder %s21, 0
      %p77 = por %p75, %p76
      %p78 = scmp.ne.s32.totalorder %s66, %s67
      %p79 = scmp.eq.s32.totalorder %s22, 1
      %p80 = por %p78, %p79
      %p82 = scmp.ne.s32.totalorder %s67, %s81
      %p83 = scmp.eq.s32.totalorder %s22, 0
      %p84 = por %p82, %p83
      %s85 = ssub.s32 %s23, %s35
      %p86 = scmp.eq.s32.totalorder %s85, 0
      %s88 = sadd.s32 %s87, 1
      %s89 = scalar_select %p86, %s87, %s88
      %p92 = pneg %p86
      %p93 = scmp.eq.s32.totalorder %s16, 1
      %p94 = por %p92, %p93
      %p95 = scmp.ne.s32.totalorder %s87, %s90
      %p96 = scmp.eq.s32.totalorder %s16, 0
      %p97 = por %p95, %p96
      %p98 = scmp.ne.s32.totalorder %s87, %s90
      %p99 = scmp.eq.s32.totalorder %s21, 1
      %p100 = por %p98, %p99
      %p101 = scmp.ne.s32.totalorder %s90, %s91
      %p102 = scmp.eq.s32.totalorder %s21, 0
      %p103 = por %p101, %p102
      %p104 = scmp.ne.s32.totalorder %s90, %s91
      %p105 = scmp.eq.s32.totalorder %s22, 1
      %p106 = por %p104, %p105
      %p108 = scmp.ne.s32.totalorder %s91, %s107
      %p109 = scmp.eq.s32.totalorder %s22, 0
      %p110 = por %p108, %p109
      %s111 = ssub.s32 %s23, %s35
      %s112 = ssub.s32 %s24, %s31
      %s113 = sor.u32 %s111, %s112
      %p114 = scmp.eq.s32.totalorder %s113, 0
      %s116 = sadd.s32 %s115, 1
      %s117 = scalar_select %p114, %s115, %s116
      %p120 = pneg %p114
      %p121 = scmp.eq.s32.totalorder %s16, 1
      %p122 = por %p120, %p121
      %p123 = scmp.ne.s32.totalorder %s115, %s118
      %p124 = scmp.eq.s32.totalorder %s16, 0
      %p125 = por %p123, %p124
      %p126 = scmp.ne.s32.totalorder %s115, %s118
      %p127 = scmp.eq.s32.totalorder %s21, 1
      %p128 = por %p126, %p127
      %p129 = scmp.ne.s32.totalorder %s118, %s119
      %p130 = scmp.eq.s32.totalorder %s21, 0
      %p131 = por %p129, %p130
      %p132 = scmp.ne.s32.totalorder %s118, %s119
      %p133 = scmp.eq.s32.totalorder %s22, 1
      %p134 = por %p132, %p133
      %p136 = scmp.ne.s32.totalorder %s119, %s135
      %p137 = scmp.eq.s32.totalorder %s22, 0
      %p138 = por %p136, %p137
      %p139 = scmp.le.s32.totalorder 1, %s16
      %p140 = scmp.lt.s32.totalorder %s16, 3
      %p141 = pnand %p139, %p140
      %p142 = pneg %p141
      // Predicated region
      $region9: #{tpu_custom_call.1} parent=5 // pred_check
        _
      $region10: #{tpu_custom_call.1} parent=5 // pred_check_branch
        %144 = sbr.rel (%p141) target = $region12
      $region11: #{tpu_custom_call.1} parent=5 // pred_region
        %s145 = ssub.s32 %s16, 1
        // Predicated region
        $region13: #{tpu_custom_call.1} parent=11 // pred_check
          %p146 = pneg %p77
        $region14: #{tpu_custom_call.1} parent=11 // pred_check_branch
          %148 = sbr.rel (%p146) target = $region16
        $region15: #{tpu_custom_call.1} parent=11 // pred_region
          %150 = vsyncadd [#allocation6], 0
          %s151 = sshll.u32 %s1, 4
          %s152 = int_to_ptr.hbm [resolvable:$true] %s151
          %s153 = sshll.u32 [#allocation5], 4
          %s154 = int_to_ptr.vmem [resolvable:$true] %s153
          %159 = dma.hbm_to_vmem [thread:$0]  %s152, 512, %s154, [#allocation6], 128, 128, 8
        $region16: #{tpu_custom_call.1} parent=11 // pred_fallthru
          _
      $region12: #{tpu_custom_call.1} parent=5 // pred_fallthru
        _
      %p160 = scmp.lt.s32.totalorder %s16, 2
      // Predicated region
      $region17: #{tpu_custom_call.1} parent=5 // pred_check
        %p161 = pneg %p160
      $region18: #{tpu_custom_call.1} parent=5 // pred_check_branch
        %163 = sbr.rel (%p161) target = $region20
      $region19: #{tpu_custom_call.1} parent=5 // pred_region
        // Predicated region
        $region21: #{tpu_custom_call.1} parent=19 // pred_check
          %p164 = pneg %p50
        $region22: #{tpu_custom_call.1} parent=19 // pred_check_branch
          %166 = sbr.rel (%p164) target = $region24
        $region23: #{tpu_custom_call.1} parent=19 // pred_region
          %s167 = sand.u32 %s16, 1
          %s168 = scalar_lea.sflag [#allocation3], %s167
          %s169 = sand.u32 %s40, 1
          %s170 = smul.addr %s169, 8
          %s171 = scalar_lea.vmem [#allocation2], %s170
          %173 = vsyncadd %s168, 0
          %s174 = sadd.s32 %s24, %s23
          %s175 = smul.addr %s174, 8
          %s176 = scalar_lea.hbm %s0, %s175
          %s178 = sshll.u32 %s176, 4
          %s179 = int_to_ptr.hbm [resolvable:$true] %s178
          %s180 = sshll.u32 %s171, 4
          %s181 = int_to_ptr.vmem [resolvable:$true] %s180
          %183 = dma.hbm_to_vmem [thread:$0]  %s179, 128, %s181, %s168
        $region24: #{tpu_custom_call.1} parent=19 // pred_fallthru
          _
        // Predicated region
        $region25: #{tpu_custom_call.1} parent=19 // pred_check
          %p184 = pneg %p97
        $region26: #{tpu_custom_call.1} parent=19 // pred_check_branch
          %186 = sbr.rel (%p184) target = $region28
        $region27: #{tpu_custom_call.1} parent=19 // pred_region
          %s187 = sand.u32 %s16, 1
          %s188 = scalar_lea.sflag [#allocation3], %s187
          %s189 = sand.u32 %s87, 1
          %s190 = scalar_lea.vmem [#allocation7], %s189
          %192 = vsyncadd %s188, 0
          %s193 = scalar_lea.hbm %s2, %s23
          %s195 = sshll.u32 %s193, 4
          %s196 = int_to_ptr.hbm [resolvable:$true] %s195
          %s197 = sshll.u32 %s190, 4
          %s198 = int_to_ptr.vmem [resolvable:$true] %s197
          %200 = dma.hbm_to_vmem [thread:$0]  %s196, 16, %s198, %s188
        $region28: #{tpu_custom_call.1} parent=19 // pred_fallthru
          _
      $region20: #{tpu_custom_call.1} parent=5 // pred_fallthru
        _
      %p201 = scmp.le.s32.totalorder 1, %s16
      %p202 = scmp.lt.s32.totalorder %s16, 3
      %p203 = pnand %p201, %p202
      %p204 = pneg %p203
      // Predicated region
      $region29: #{tpu_custom_call.1} parent=5 // pred_check
        _
      $region30: #{tpu_custom_call.1} parent=5 // pred_check_branch
        %206 = sbr.rel (%p203) target = $region32
      $region31: #{tpu_custom_call.1} parent=5 // pred_region
        %s207 = ssub.s32 %s16, 1
        %s208 = sand.u32 %s21, 1
        %s209 = scalar_lea.sflag [#allocation3], %s208
        %s210 = sand.u32 %s43, 1
        %s211 = smul.addr %s210, 8
        %s212 = scalar_lea.vmem [#allocation2], %s211
        // Predicated region
        $region33: #{tpu_custom_call.1} parent=31 // pred_check
          %p213 = pneg %p56
        $region34: #{tpu_custom_call.1} parent=31 // pred_check_branch
          %215 = sbr.rel (%p213) target = $region36
        $region35: #{tpu_custom_call.1} parent=31 // pred_region
          %217 = dma.done %s209, 128
        $region36: #{tpu_custom_call.1} parent=31 // pred_fallthru
          _
        // Predicated region
        $region37: #{tpu_custom_call.1} parent=31 // pred_check
          %p218 = pneg %p77
        $region38: #{tpu_custom_call.1} parent=31 // pred_check_branch
          %220 = sbr.rel (%p218) target = $region40
        $region39: #{tpu_custom_call.1} parent=31 // pred_region
          %222 = dma.done [#allocation6], 512
        $region40: #{tpu_custom_call.1} parent=31 // pred_fallthru
          _
        %s223 = sand.u32 %s21, 1
        %s224 = scalar_lea.sflag [#allocation3], %s223
        %s225 = sand.u32 %s90, 1
        %s226 = scalar_lea.vmem [#allocation7], %s225
        // Predicated region
        $region41: #{tpu_custom_call.1} parent=31 // pred_check
          %p227 = pneg %p103
        $region42: #{tpu_custom_call.1} parent=31 // pred_check_branch
          %229 = sbr.rel (%p227) target = $region44
        $region43: #{tpu_custom_call.1} parent=31 // pred_region
          %231 = dma.done %s224, 16
        $region44: #{tpu_custom_call.1} parent=31 // pred_fallthru
          _
        %s232 = sand.u32 %s21, 1
        %s233 = scalar_lea.sflag [#allocation3], %s232
        %s234 = sand.u32 %s43, 1
        %s235 = smul.addr %s234, 8
        %s236 = scalar_lea.vmem [#allocation2], %s235
        %p237 = pneg %p56
        %p238 = pneg %p53
        %p239 = pneg %p77
        %p240 = pneg %p74
        %s241 = sand.u32 %s21, 1
        %s242 = scalar_lea.sflag [#allocation3], %s241
        %s243 = sand.u32 %s90, 1
        %s244 = scalar_lea.vmem [#allocation7], %s243
        %p245 = pneg %p103
        %p246 = pneg %p100
        %p247 = pneg %p131
        %p248 = pneg %p128
        %s249 = sand.u32 %s118, 1
        %s250 = scalar_lea.sflag [#allocation4], %s249
        %s251 = sand.u32 %s118, 1
        %s252 = smul.addr %s251, 8
        %s253 = scalar_lea.vmem [#allocation8], %s252
        %v254 = vld [vmem:[%s212] sm:$0xff]
        %v255 = vld [vmem:[#allocation5] sm:$0xff]
        %v256 = vld [vmem:[#allocation5 + $0x8] sm:$0xff]
        %v257 = vld [vmem:[#allocation5 + $0x10] sm:$0xff]
        %v258 = vld [vmem:[#allocation5 + $0x18] sm:$0xff]
        %v259 = vld [vmem:[%s226] sm:$0x1]
        %v261 = vperm.slane %v259, 0
        %vm263 = vcmask 261120
        %v265 = vsel %vm263, %v254, 0
        %267 = vmatpush.msra.mxu0 0.0
        %268 = vmatpush.msra.mxu0 0.0
        %269 = vmatpush.msra.mxu0 0.0
        %270 = vmatpush.msra.mxu0 0.0
        %271 = vmatpush.msra.mxu0 0.0
        %272 = vmatpush.msra.mxu0 0.0
        %273 = vmatpush.msra.mxu0 0.0
        %274 = vmatpush.msra.mxu0 0.0
        %275 = vmatpush.msra.mxu0 0.0
        %276 = vmatpush.msra.mxu0 0.0
        %277 = vmatpush.msra.mxu0 0.0
        %278 = vmatpush.msra.mxu0 0.0
        %279 = vmatpush.msra.mxu0 %v258
        %280 = vmatpush.msra.mxu0 %v257
        %281 = vmatpush.msra.mxu0 %v256
        %282 = vmatpush.msra.mxu0 %v255
        %283 = vmatmul.f32.gmra.mxu0 %v265
        %v284 = vpop.f32.mrf.mxu0
        %v285 = vadd.f32 %v261, %v284
        %286 = vdwg.mxu0
        %v287 = vmul.f32 %v285, 0.5
        %v288 = vmul.f32 %v285, 0.70710677
        %v289 = vmul.f32 %v288, %v288
        %v290 = vmin.f32 16.0, %v289
        %v291 = vmul.f32 %v290, 2.1237322e-06
        %v292 = vadd.f32 %v291, 0.00028619796
        %v293 = vmul.f32 %v290, %v292
        %v294 = vadd.f32 %v293, 0.0036580483
        %v295 = vmul.f32 %v290, %v294
        %v296 = vadd.f32 %v295, 0.05243302
        %v297 = vmul.f32 %v290, %v296
        %v298 = vadd.f32 %v297, 0.18741608
        %v299 = vmul.f32 %v290, %v298
        %v300 = vadd.f32 %v299, 1.1283791
        %v301 = vmul.f32 %v288, %v300
        %v302 = vmul.f32 %v290, 3.8918573e-05
        %v303 = vadd.f32 %v302, 0.001143296
        %v304 = vmul.f32 %v290, %v303
        %v305 = vadd.f32 %v304, 0.014752088
        %v306 = vmul.f32 %v290, %v305
        %v307 = vadd.f32 %v306, 0.112945676
        %v308 = vmul.f32 %v290, %v307
        %v309 = vadd.f32 %v308, 0.4994258
        %v310 = vmul.f32 %v290, %v309
        %v311 = vadd.f32 %v310, 1.0
        %v312 = vrcp.pop %v311
        %v313 = vmul.f32 %v311, %v312
        %v314 = vsub.f32 1.0, %v313
        %v315 = vmul.f32 %v312, %v314
        %v316 = vadd.f32 %v312, %v315
        %vm317 = vweird.f32 %v311
        %vm318 = vweird.f32 %v312
        %vm319 = vmor %vm317, %vm318
        %v320 = vsel %vm319, %v312, %v316
        %v321 = vand.u32 2147483647, %v311
        %vm322 = vcmp.eq.f32.partialorder %v321, 8.507059e+37
        %v323 = vand.u32 %v311, 2147483648
        %v324 = vor.u32 1.1754944e-38, %v323
        %v325 = vsel %vm322, %v324, %v320
        %v326 = vmul.f32 %v301, %v325
        %v327 = vmin.f32 %v326, 1.0
        %v328 = vmax.f32 %v327, -1.0
        %v329 = vadd.f32 %v328, 1.0
        %v330 = vmul.f32 %v287, %v329
        %331 = vst [vmem:[%s253] sm:$0xff] %v330
        %s332 = sand.u32 %s118, 1
        %s333 = scalar_lea.sflag [#allocation4], %s332
        %s334 = sand.u32 %s118, 1
        %s335 = smul.addr %s334, 8
        %s336 = scalar_lea.vmem [#allocation8], %s335
        // Predicated region
        $region45: #{tpu_custom_call.1} parent=31 // pred_check
          %p337 = pneg %p128
        $region46: #{tpu_custom_call.1} parent=31 // pred_check_branch
          %339 = sbr.rel (%p337) target = $region48
        $region47: #{tpu_custom_call.1} parent=31 // pred_region
          %341 = vsyncadd %s333, 0
          %s342 = sadd.s32 %s26, %s25
          %s343 = smul.addr %s342, 8
          %s344 = scalar_lea.hbm %s3, %s343
          %s346 = sshll.u32 %s336, 4
          %s347 = int_to_ptr.vmem [resolvable:$true] %s346
          %s348 = sshll.u32 %s344, 4
          %s349 = int_to_ptr.hbm [resolvable:$true] %s348
          %351 = dma.vmem_to_hbm [thread:$0]  %s347, 128, %s349, %s333
        $region48: #{tpu_custom_call.1} parent=31 // pred_fallthru
          _
      $region32: #{tpu_custom_call.1} parent=5 // pred_fallthru
        _
      %p352 = scmp.le.s32.totalorder 2, %s16
      // Predicated region
      $region49: #{tpu_custom_call.1} parent=5 // pred_check
        %p353 = pneg %p352
      $region50: #{tpu_custom_call.1} parent=5 // pred_check_branch
        %355 = sbr.rel (%p353) target = $region52
      $region51: #{tpu_custom_call.1} parent=5 // pred_region
        %s356 = ssub.s32 %s16, 2
        // Predicated region
        $region53: #{tpu_custom_call.1} parent=51 // pred_check
          %p357 = pneg %p134
        $region54: #{tpu_custom_call.1} parent=51 // pred_check_branch
          %359 = sbr.rel (%p357) target = $region56
        $region55: #{tpu_custom_call.1} parent=51 // pred_region
          %s360 = sand.u32 %s119, 1
          %s361 = scalar_lea.sflag [#allocation4], %s360
          %s362 = sand.u32 %s119, 1
          %s363 = smul.addr %s362, 8
          %s364 = scalar_lea.vmem [#allocation8], %s363
          %366 = dma.done %s361, 128
        $region56: #{tpu_custom_call.1} parent=51 // pred_fallthru
          _
      $region52: #{tpu_custom_call.1} parent=5 // pred_fallthru
        _
    $region6: #{tpu_custom_call.1} parent=1 // loop_footer
      %s20 = sadd.s32 1, %s16
    $region7: #{tpu_custom_call.1} parent=1 // loop_footer_branch
      %15 = sbr.rel target = $region3
    $region8: #{tpu_custom_call.1} parent=1 // loop_exit
      _
    %367 = vsyncpa [#allocation3], 1
    %s368 = scalar_lea.sflag [#allocation3], 1
    %369 = vsyncpa %s368, 1
    %370 = vsyncpa [#allocation6], 1
    %371 = vsyncpa [#allocation4], 1
    %s372 = scalar_lea.sflag [#allocation4], 1
    %373 = vsyncpa %s372, 1

// kernel: tpu_custom_call.1
$region0: #{tpu_custom_call.1}
  #allocation0 [shape = 'u32[]', space=smem, size = 0x4, offset = 0x4, fixed_abs, tag = 'smem constant byte address 0x4 - core index']
  #allocation1 [shape = 'u32[72,128]{1,0:T(1,128)}', space=vmem, size = 0x9000, scoped, tag = 'internal scratch']
  %s0 = inlined_call_operand.hbm [shape: f32[2,8,32], index: 0, kind: input, shape index: {}]
  %s1 = inlined_call_operand.hbm [shape: f32[32,128], index: 1, kind: input, shape index: {}]
  %s2 = inlined_call_operand.hbm [shape: f32[2,1,128], index: 2, kind: input, shape index: {}]
  %s3 = inlined_call_operand.hbm [shape: f32[2,8,128], index: 3, kind: output, shape index: {}]
  %s4 = sld [smem:[#allocation0]]
  $region57: #{tpu_custom_call.1} parent=0
    _
  %s6 = ssub.s32 1, %s4
  %s7 = scalar_select 0, %s6, %s4
  $region1: #{tpu_custom_call.1} parent=0
    #allocation2 [shape = 'u8[8192]{0}', space=vmem, size = 0x2000, scoped, tag = 'input window, operand 0']
    #allocation3 [shape = 's32[2]{0}', space=sflag, size = 0x8, scoped, tag = 'scoped memory for tpu_custom_call.1']
    #allocation4 [shape = 's32[2]{0}', space=sflag, size = 0x8, scoped, tag = 'scoped memory for tpu_custom_call.1']
    #allocation5 [shape = 'u8[16384]{0}', space=vmem, size = 0x4000, scoped, tag = 'input window, operand 1, single buffered']
    #allocation6 [shape = 's32[1]{0}', space=sflag, size = 0x4, scoped, tag = 'scoped memory for tpu_custom_call.1']
    #allocation7 [shape = 'u8[1024]{0}', space=vmem, size = 0x400, scoped, tag = 'input window, operand 2']
    #allocation8 [shape = 'u8[8192]{0}', space=vmem, size = 0x2000, scoped, tag = 'output window, operand 0']
    %8 = vsyncpa [#allocation3], 0
    %s9 = scalar_lea.sflag [#allocation3], 1
    %10 = vsyncpa %s9, 0
    %11 = vsyncpa [#allocation6], 0
    %12 = vsyncpa [#allocation4], 0
    %s13 = scalar_lea.sflag [#allocation4], 1
    %14 = vsyncpa %s13, 0
    loop: start=0, step=1, limit=4
    $region2: #{tpu_custom_call.1} parent=1 // loop_pre_header
      _
    $region3: #{tpu_custom_call.1} parent=1 // loop_header
      %s16 = sphi 0, %s20
      %p17 = scmp.ge.s32.totalorder %s16, 4
      %s23 = sphi 0, %s35
      %s24 = sphi 0, %s31
      %s25 = sphi 0, %s23
      %s26 = sphi 0, %s24
      %s27 = sphi 0, %s25
      %s28 = sphi 0, %s26
      %s40 = sphi 0, %s42
      %s43 = sphi 0, %s40
      %s44 = sphi 0, %s43
      %s60 = sphi 0, %s44
      %s64 = sphi 0, %s64
      %s66 = sphi 0, %s64
      %s67 = sphi 0, %s66
      %s81 = sphi 0, %s67
      %s87 = sphi 0, %s89
      %s90 = sphi 0, %s87
      %s91 = sphi 0, %s90
      %s107 = sphi 0, %s91
      %s115 = sphi 0, %s117
      %s118 = sphi 0, %s115
      %s119 = sphi 0, %s118
      %s135 = sphi 0, %s119
    $region4: #{tpu_custom_call.1} parent=1 // loop_header_branch
      %19 = sbr.rel (%p17) target = $region8
    $region5: #{tpu_custom_call.1} parent=1 // loop_body
      %s21 = ssub.s32 %s16, 1
      %s22 = ssub.s32 %s16, 2
      %s29 = sadd.s32 1, %s24
      %p30 = scmp.ge.s32.totalorder %s29, 1
      %s31 = scalar_select %p30, 0, %s29
      %s32 = sadd.s32 1, %s23
      %s33 = scalar_select %p30, %s32, %s23
      %p34 = scmp.ge.s32.totalorder %s33, 2
      %s35 = scalar_select %p34, 0, %s33
      %s36 = ssub.s32 %s23, %s35
      %s37 = ssub.s32 %s24, %s31
      %s38 = sor.u32 %s36, %s37
      %p39 = scmp.eq.s32.totalorder %s38, 0
      %s41 = sadd.s32 %s40, 1
      %s42 = scalar_select %p39, %s40, %s41
      %p45 = pneg %p39
      %p46 = scmp.eq.s32.totalorder %s16, 1
      %p47 = por %p45, %p46
      %p48 = scmp.ne.s32.totalorder %s40, %s43
      %p49 = scmp.eq.s32.totalorder %s16, 0
      %p50 = por %p48, %p49
      %p51 = scmp.ne.s32.totalorder %s40, %s43
      %p52 = scmp.eq.s32.totalorder %s21, 1
      %p53 = por %p51, %p52
      %p54 = scmp.ne.s32.totalorder %s43, %s44
      %p55 = scmp.eq.s32.totalorder %s21, 0
      %p56 = por %p54, %p55
      %p57 = scmp.ne.s32.totalorder %s43, %s44
      %p58 = scmp.eq.s32.totalorder %s22, 1
      %p59 = por %p57, %p58
      %p61 = scmp.ne.s32.totalorder %s44, %s60
      %p62 = scmp.eq.s32.totalorder %s22, 0
      %p63 = por %p61, %p62
      %s65 = sadd.s32 %s64, 1
      %p68 = scmp.eq.s32.totalorder %s16, 1
      %p69 = scmp.ne.s32.totalorder %s64, %s66
      %p70 = scmp.eq.s32.totalorder %s16, 0
      %p71 = por %p69, %p70
      %p72 = scmp.ne.s32.totalorder %s64, %s66
      %p73 = scmp.eq.s32.totalorder %s21, 1
      %p74 = por %p72, %p73
      %p75 = scmp.ne.s32.totalorder %s66, %s67
      %p76 = scmp.eq.s32.totalorder %s21, 0
      %p77 = por %p75, %p76
      %p78 = scmp.ne.s32.totalorder %s66, %s67
      %p79 = scmp.eq.s32.totalorder %s22, 1
      %p80 = por %p78, %p79
      %p82 = scmp.ne.s32.totalorder %s67, %s81
      %p83 = scmp.eq.s32.totalorder %s22, 0
      %p84 = por %p82, %p83
      %s85 = ssub.s32 %s23, %s35
      %p86 = scmp.eq.s32.totalorder %s85, 0
      %s88 = sadd.s32 %s87, 1
      %s89 = scalar_select %p86, %s87, %s88
      %p92 = pneg %p86
      %p93 = scmp.eq.s32.totalorder %s16, 1
      %p94 = por %p92, %p93
      %p95 = scmp.ne.s32.totalorder %s87, %s90
      %p96 = scmp.eq.s32.totalorder %s16, 0
      %p97 = por %p95, %p96
      %p98 = scmp.ne.s32.totalorder %s87, %s90
      %p99 = scmp.eq.s32.totalorder %s21, 1
      %p100 = por %p98, %p99
      %p101 = scmp.ne.s32.totalorder %s90, %s91
      %p102 = scmp.eq.s32.totalorder %s21, 0
      %p103 = por %p101, %p102
      %p104 = scmp.ne.s32.totalorder %s90, %s91
      %p105 = scmp.eq.s32.totalorder %s22, 1
      %p106 = por %p104, %p105
      %p108 = scmp.ne.s32.totalorder %s91, %s107
      %p109 = scmp.eq.s32.totalorder %s22, 0
      %p110 = por %p108, %p109
      %s111 = ssub.s32 %s23, %s35
      %s112 = ssub.s32 %s24, %s31
      %s113 = sor.u32 %s111, %s112
      %p114 = scmp.eq.s32.totalorder %s113, 0
      %s116 = sadd.s32 %s115, 1
      %s117 = scalar_select %p114, %s115, %s116
      %p120 = pneg %p114
      %p121 = scmp.eq.s32.totalorder %s16, 1
      %p122 = por %p120, %p121
      %p123 = scmp.ne.s32.totalorder %s115, %s118
      %p124 = scmp.eq.s32.totalorder %s16, 0
      %p125 = por %p123, %p124
      %p126 = scmp.ne.s32.totalorder %s115, %s118
      %p127 = scmp.eq.s32.totalorder %s21, 1
      %p128 = por %p126, %p127
      %p129 = scmp.ne.s32.totalorder %s118, %s119
      %p130 = scmp.eq.s32.totalorder %s21, 0
      %p131 = por %p129, %p130
      %p132 = scmp.ne.s32.totalorder %s118, %s119
      %p133 = scmp.eq.s32.totalorder %s22, 1
      %p134 = por %p132, %p133
      %p136 = scmp.ne.s32.totalorder %s119, %s135
      %p137 = scmp.eq.s32.totalorder %s22, 0
      %p138 = por %p136, %p137
      %p139 = scmp.le.s32.totalorder 1, %s16
      %p140 = scmp.lt.s32.totalorder %s16, 3
      %p141 = pnand %p139, %p140
      %p142 = pneg %p141
      // Predicated region
      $region9: #{tpu_custom_call.1} parent=5 // pred_check
        _
      $region10: #{tpu_custom_call.1} parent=5 // pred_check_branch
        %144 = sbr.rel (%p141) target = $region12
      $region11: #{tpu_custom_call.1} parent=5 // pred_region
        %s145 = ssub.s32 %s16, 1
        // Predicated region
        $region13: #{tpu_custom_call.1} parent=11 // pred_check
          %p146 = pneg %p77
        $region14: #{tpu_custom_call.1} parent=11 // pred_check_branch
          %148 = sbr.rel (%p146) target = $region16
        $region15: #{tpu_custom_call.1} parent=11 // pred_region
          %150 = vsyncadd [#allocation6], 0
          %s151 = sshll.u32 %s1, 4
          %s152 = int_to_ptr.hbm [resolvable:$true] %s151
          %s153 = sshll.u32 [#allocation5], 4
          %s154 = int_to_ptr.vmem [resolvable:$true] %s153
          %159 = dma.hbm_to_vmem [thread:$0]  %s152, 512, %s154, [#allocation6], 128, 128, 8
        $region16: #{tpu_custom_call.1} parent=11 // pred_fallthru
          _
      $region12: #{tpu_custom_call.1} parent=5 // pred_fallthru
        _
      %p160 = scmp.lt.s32.totalorder %s16, 2
      // Predicated region
      $region17: #{tpu_custom_call.1} parent=5 // pred_check
        %p161 = pneg %p160
      $region18: #{tpu_custom_call.1} parent=5 // pred_check_branch
        %163 = sbr.rel (%p161) target = $region20
      $region19: #{tpu_custom_call.1} parent=5 // pred_region
        // Predicated region
        $region21: #{tpu_custom_call.1} parent=19 // pred_check
          %p164 = pneg %p50
        $region22: #{tpu_custom_call.1} parent=19 // pred_check_branch
          %166 = sbr.rel (%p164) target = $region24
        $region23: #{tpu_custom_call.1} parent=19 // pred_region
          %s167 = sand.u32 %s16, 1
          %s168 = scalar_lea.sflag [#allocation3], %s167
          %s169 = sand.u32 %s40, 1
          %s170 = smul.addr %s169, 8
          %s171 = scalar_lea.vmem [#allocation2], %s170
          %173 = vsyncadd %s168, 0
          %s174 = sadd.s32 %s24, %s23
          %s175 = smul.addr %s174, 8
          %s176 = scalar_lea.hbm %s0, %s175
          %s178 = sshll.u32 %s176, 4
          %s179 = int_to_ptr.hbm [resolvable:$true] %s178
          %s180 = sshll.u32 %s171, 4
          %s181 = int_to_ptr.vmem [resolvable:$true] %s180
          %183 = dma.hbm_to_vmem [thread:$0]  %s179, 128, %s181, %s168
        $region24: #{tpu_custom_call.1} parent=19 // pred_fallthru
          _
        // Predicated region
        $region25: #{tpu_custom_call.1} parent=19 // pred_check
          %p184 = pneg %p97
        $region26: #{tpu_custom_call.1} parent=19 // pred_check_branch
          %186 = sbr.rel (%p184) target = $region28
        $region27: #{tpu_custom_call.1} parent=19 // pred_region
          %s187 = sand.u32 %s16, 1
          %s188 = scalar_lea.sflag [#allocation3], %s187
          %s189 = sand.u32 %s87, 1
          %s190 = scalar_lea.vmem [#allocation7], %s189
          %192 = vsyncadd %s188, 0
          %s193 = scalar_lea.hbm %s2, %s23
          %s195 = sshll.u32 %s193, 4
          %s196 = int_to_ptr.hbm [resolvable:$true] %s195
          %s197 = sshll.u32 %s190, 4
          %s198 = int_to_ptr.vmem [resolvable:$true] %s197
          %200 = dma.hbm_to_vmem [thread:$0]  %s196, 16, %s198, %s188
        $region28: #{tpu_custom_call.1} parent=19 // pred_fallthru
          _
      $region20: #{tpu_custom_call.1} parent=5 // pred_fallthru
        _
      %p201 = scmp.le.s32.totalorder 1, %s16
      %p202 = scmp.lt.s32.totalorder %s16, 3
      %p203 = pnand %p201, %p202
      %p204 = pneg %p203
      // Predicated region
      $region29: #{tpu_custom_call.1} parent=5 // pred_check
        _
      $region30: #{tpu_custom_call.1} parent=5 // pred_check_branch
        %206 = sbr.rel (%p203) target = $region32
      $region31: #{tpu_custom_call.1} parent=5 // pred_region
        %s207 = ssub.s32 %s16, 1
        %s208 = sand.u32 %s21, 1
        %s209 = scalar_lea.sflag [#allocation3], %s208
        %s210 = sand.u32 %s43, 1
        %s211 = smul.addr %s210, 8
        %s212 = scalar_lea.vmem [#allocation2], %s211
        // Predicated region
        $region33: #{tpu_custom_call.1} parent=31 // pred_check
          %p213 = pneg %p56
        $region34: #{tpu_custom_call.1} parent=31 // pred_check_branch
          %215 = sbr.rel (%p213) target = $region36
        $region35: #{tpu_custom_call.1} parent=31 // pred_region
          %217 = dma.done %s209, 128
        $region36: #{tpu_custom_call.1} parent=31 // pred_fallthru
          _
        // Predicated region
        $region37: #{tpu_custom_call.1} parent=31 // pred_check
          %p218 = pneg %p77
        $region38: #{tpu_custom_call.1} parent=31 // pred_check_branch
          %220 = sbr.rel (%p218) target = $region40
        $region39: #{tpu_custom_call.1} parent=31 // pred_region
          %222 = dma.done [#allocation6], 512
        $region40: #{tpu_custom_call.1} parent=31 // pred_fallthru
          _
        %s223 = sand.u32 %s21, 1
        %s224 = scalar_lea.sflag [#allocation3], %s223
        %s225 = sand.u32 %s90, 1
        %s226 = scalar_lea.vmem [#allocation7], %s225
        // Predicated region
        $region41: #{tpu_custom_call.1} parent=31 // pred_check
          %p227 = pneg %p103
        $region42: #{tpu_custom_call.1} parent=31 // pred_check_branch
          %229 = sbr.rel (%p227) target = $region44
        $region43: #{tpu_custom_call.1} parent=31 // pred_region
          %231 = dma.done %s224, 16
        $region44: #{tpu_custom_call.1} parent=31 // pred_fallthru
          _
        %s232 = sand.u32 %s21, 1
        %s233 = scalar_lea.sflag [#allocation3], %s232
        %s234 = sand.u32 %s43, 1
        %s235 = smul.addr %s234, 8
        %s236 = scalar_lea.vmem [#allocation2], %s235
        %p237 = pneg %p56
        %p238 = pneg %p53
        %p239 = pneg %p77
        %p240 = pneg %p74
        %s241 = sand.u32 %s21, 1
        %s242 = scalar_lea.sflag [#allocation3], %s241
        %s243 = sand.u32 %s90, 1
        %s244 = scalar_lea.vmem [#allocation7], %s243
        %p245 = pneg %p103
        %p246 = pneg %p100
        %p247 = pneg %p131
        %p248 = pneg %p128
        %s249 = sand.u32 %s118, 1
        %s250 = scalar_lea.sflag [#allocation4], %s249
        %s251 = sand.u32 %s118, 1
        %s252 = smul.addr %s251, 8
        %s253 = scalar_lea.vmem [#allocation8], %s252
        %v254 = vld [vmem:[%s212] sm:$0xff]
        %v255 = vld [vmem:[#allocation5] sm:$0xff]
        %v256 = vld [vmem:[#allocation5 + $0x8] sm:$0xff]
        %v257 = vld [vmem:[#allocation5 + $0x10] sm:$0xff]
        %v258 = vld [vmem:[#allocation5 + $0x18] sm:$0xff]
        %v259 = vld [vmem:[%s226] sm:$0x1]
        %v261 = vperm.slane %v259, 0
        %vm263 = vcmask 261120
        %v265 = vsel %vm263, %v254, 0
        %267 = vmatpush.msra.mxu0 0.0
        %268 = vmatpush.msra.mxu0 0.0
        %269 = vmatpush.msra.mxu0 0.0
        %270 = vmatpush.msra.mxu0 0.0
        %271 = vmatpush.msra.mxu0 0.0
        %272 = vmatpush.msra.mxu0 0.0
        %273 = vmatpush.msra.mxu0 0.0
        %274 = vmatpush.msra.mxu0 0.0
        %275 = vmatpush.msra.mxu0 0.0
        %276 = vmatpush.msra.mxu0 0.0
        %277 = vmatpush.msra.mxu0 0.0
        %278 = vmatpush.msra.mxu0 0.0
        %279 = vmatpush.msra.mxu0 %v258
        %280 = vmatpush.msra.mxu0 %v257
        %281 = vmatpush.msra.mxu0 %v256
        %282 = vmatpush.msra.mxu0 %v255
        %283 = vmatmul.f32.gmra.mxu0 %v265
        %v284 = vpop.f32.mrf.mxu0
        %v285 = vadd.f32 %v261, %v284
        %286 = vdwg.mxu0
        %v287 = vmul.f32 %v285, 0.5
        %v288 = vmul.f32 %v285, 0.70710677
        %v289 = vmul.f32 %v288, %v288
        %v290 = vmin.f32 16.0, %v289
        %v291 = vmul.f32 %v290, 2.1237322e-06
        %v292 = vadd.f32 %v291, 0.00028619796
        %v293 = vmul.f32 %v290, %v292
        %v294 = vadd.f32 %v293, 0.0036580483
        %v295 = vmul.f32 %v290, %v294
        %v296 = vadd.f32 %v295, 0.05243302
        %v297 = vmul.f32 %v290, %v296
        %v298 = vadd.f32 %v297, 0.18741608
        %v299 = vmul.f32 %v290, %v298
        %v300 = vadd.f32 %v299, 1.1283791
        %v301 = vmul.f32 %v288, %v300
        %v302 = vmul.f32 %v290, 3.8918573e-05
        %v303 = vadd.f32 %v302, 0.001143296
        %v304 = vmul.f32 %v290, %v303
        %v305 = vadd.f32 %v304, 0.014752088
        %v306 = vmul.f32 %v290, %v305
        %v307 = vadd.f32 %v306, 0.112945676
        %v308 = vmul.f32 %v290, %v307
        %v309 = vadd.f32 %v308, 0.4994258
        %v310 = vmul.f32 %v290, %v309
        %v311 = vadd.f32 %v310, 1.0
        %v312 = vrcp.pop %v311
        %v313 = vmul.f32 %v311, %v312
        %v314 = vsub.f32 1.0, %v313
        %v315 = vmul.f32 %v312, %v314
        %v316 = vadd.f32 %v312, %v315
        %vm317 = vweird.f32 %v311
        %vm318 = vweird.f32 %v312
        %vm319 = vmor %vm317, %vm318
        %v320 = vsel %vm319, %v312, %v316
        %v321 = vand.u32 2147483647, %v311
        %vm322 = vcmp.eq.f32.partialorder %v321, 8.507059e+37
        %v323 = vand.u32 %v311, 2147483648
        %v324 = vor.u32 1.1754944e-38, %v323
        %v325 = vsel %vm322, %v324, %v320
        %v326 = vmul.f32 %v301, %v325
        %v327 = vmin.f32 %v326, 1.0
        %v328 = vmax.f32 %v327, -1.0
        %v329 = vadd.f32 %v328, 1.0
        %v330 = vmul.f32 %v287, %v329
        %331 = vst [vmem:[%s253] sm:$0xff] %v330
        %s332 = sand.u32 %s118, 1
        %s333 = scalar_lea.sflag [#allocation4], %s332
        %s334 = sand.u32 %s118, 1
        %s335 = smul.addr %s334, 8
        %s336 = scalar_lea.vmem [#allocation8], %s335
        // Predicated region
        $region45: #{tpu_custom_call.1} parent=31 // pred_check
          %p337 = pneg %p128
        $region46: #{tpu_custom_call.1} parent=31 // pred_check_branch
          %339 = sbr.rel (%p337) target = $region48
        $region47: #{tpu_custom_call.1} parent=31 // pred_region
          %341 = vsyncadd %s333, 0
          %s342 = sadd.s32 %s26, %s25
          %s343 = smul.addr %s342, 8
          %s344 = scalar_lea.hbm %s3, %s343
          %s346 = sshll.u32 %s336, 4
          %s347 = int_to_ptr.vmem [resolvable:$true] %s346
          %s348 = sshll.u32 %s344, 4
          %s349 = int_to_ptr.hbm [resolvable:$true] %s348
          %351 = dma.vmem_to_hbm [thread:$0]  %s347, 128, %s349, %s333
        $region48: #{tpu_custom_call.1} parent=31 // pred_fallthru
          _
      $region32: #{tpu_custom_call.1} parent=5 // pred_fallthru
        _
      %p352 = scmp.le.s32.totalorder 2, %s16
      // Predicated region
      $region49: #{tpu_custom_call.1} parent=5 // pred_check
        %p353 = pneg %p352
      $region50: #{tpu_custom_call.1} parent=5 // pred_check_branch
        %355 = sbr.rel (%p353) target = $region52
      $region51: #{tpu_custom_call.1} parent=5 // pred_region
        %s356 = ssub.s32 %s16, 2
        // Predicated region
        $region53: #{tpu_custom_call.1} parent=51 // pred_check
          %p357 = pneg %p134
        $region54: #{tpu_custom_call.1} parent=51 // pred_check_branch
          %359 = sbr.rel (%p357) target = $region56
        $region55: #{tpu_custom_call.1} parent=51 // pred_region
          %s360 = sand.u32 %s119, 1
          %s361 = scalar_lea.sflag [#allocation4], %s360
          %s362 = sand.u32 %s119, 1
          %s363 = smul.addr %s362, 8
          %s364 = scalar_lea.vmem [#allocation8], %s363
          %366 = dma.done %s361, 128
        $region56: #{tpu_custom_call.1} parent=51 // pred_fallthru
          _
      $region52: #{tpu_custom_call.1} parent=5 // pred_fallthru
        _
    $region6: #{tpu_custom_call.1} parent=1 // loop_footer
      %s20 = sadd.s32 1, %s16
    $region7: #{tpu_custom_call.1} parent=1 // loop_footer_branch
      %15 = sbr.rel target = $region3
    $region8: #{tpu_custom_call.1} parent=1 // loop_exit
      _
    %367 = vsyncpa [#allocation3], 1
    %s368 = scalar_lea.sflag [#allocation3], 1
    %369 = vsyncpa %s368, 1
    %370 = vsyncpa [#allocation6], 1
    %371 = vsyncpa [#allocation4], 1
    %s372 = scalar_lea.sflag [#allocation4], 1
    %373 = vsyncpa %s372, 1

</llo_original>
